<compile_context>
chip_gen: v5e
topology: v5e:2x2
jax: 0.10.0
libtpu: 0.0.40
codegen_flags: <defaults>
</compile_context>

<pallas_src>
import jax
import jax.numpy as jnp
from jax.experimental import pallas as pl
from jax.experimental.pallas import tpu as pltpu

KERNEL_SIZES = (2, 3, 4, 5, 6)                                   # Ks
KERNEL_NUM = 5                                                   # Co
TAP_OFFSETS = tuple(int(sum(KERNEL_SIZES[:i]))                   # (0, 2, 5, 9, 14)
                    for i in range(len(KERNEL_SIZES)))
TOTAL_TAPS = int(sum(KERNEL_SIZES))                              # 20


def kimcnn_kernel(x_ref, wstack_ref, bstack_ref, fcw_ref, fcb_ref,
                  out_ref, feat_ref):
    """Whole batched forward pass in one kernel invocation (tiny shapes, no grid).

      x_ref      : (N, S, D)                activations
      wstack_ref : (D, TOTAL_TAPS * Co)     all conv taps, tap-major
      bstack_ref : (1, F)   F = len(Ks)*Co  all conv biases
      fcw_ref    : (F, C)                   fc weight, pre-transposed
      fcb_ref    : (1, C)
      out_ref    : (N, C)                   softmax probabilities
      feat_ref   : (N, F) VMEM scratch      pooled (pre-bias) features
    """
    N, S, D = x_ref.shape
    Co = feat_ref.shape[1] // len(KERNEL_SIZES)

    # One fused MXU matmul for every tap of every kernel size, batched over N:
    #   Y[n*S + s, tap*Co + co] = x[n, s, :] @ w_tap[:, co]
    x2 = x_ref[...].reshape(N * S, D)
    y = jnp.dot(x2, wstack_ref[...], preferred_element_type=jnp.float32)
    y3 = y.reshape(N, S, TOTAL_TAPS * Co)

    # Valid conv = shift-add of tap slices; max-pool over time.  Pooled raw
    # features go straight into lane-contiguous slices of the (N, F) scratch
    # (no concatenates).
    for i, K in enumerate(KERNEL_SIZES):
        T = S - K + 1
        off = TAP_OFFSETS[i] * Co
        acc = y3[:, 0:T, off:off + Co]                           # (N, T, Co)
        for k in range(1, K):
            acc = acc + y3[:, k:k + T, off + k * Co:off + (k + 1) * Co]
        feat_ref[:, i * Co:(i + 1) * Co] = jnp.max(acc, axis=1)  # (N, Co)

    # Bias + ReLU once, batched (monotone ops commute with the max-pool above).
    feat = jnp.maximum(feat_ref[...] + bstack_ref[...], 0.0)     # (N, F)
    # TODO(synk): nn.Dropout(0.5) is stochastic in train mode; implemented as
    # the eval-mode identity here.

    # Batched classifier + softmax.
    logits = jnp.dot(feat, fcw_ref[...],
                     preferred_element_type=jnp.float32) + fcb_ref[...]  # (N, C)
    m = jnp.max(logits, axis=-1, keepdims=True)
    e = jnp.exp(logits - m)
    denom = jnp.sum(e, axis=-1, keepdims=True)
    out_ref[...] = e * pl.reciprocal(denom, approx=True)


def kimcnn_forward(x, conv_ws, conv_bs, fc_w, fc_b):
    """x: (N, S, D); conv_ws[i]: (Ks[i], D, Co); conv_bs[i]: (1, Co);
       fc_w: (F, C); fc_b: (1, C).  Returns (N, C) softmax probabilities."""
    N, S, D = x.shape
    Co = conv_ws[0].shape[-1]
    F_dim = len(KERNEL_SIZES) * Co
    C = fc_w.shape[1]

    # Pack every tap of every kernel size into a single (D, TOTAL_TAPS*Co) MXU
    # operand (tap-major), and all conv biases into one (1, F) row.
    w_stack = jnp.concatenate(
        [w[k] for w in conv_ws for k in range(w.shape[0])], axis=1)
    b_stack = jnp.concatenate([b.reshape(1, Co) for b in conv_bs], axis=1)

    vmem = pltpu.MemorySpace.VMEM
    return pl.pallas_call(
        kimcnn_kernel,
        out_shape=jax.ShapeDtypeStruct((N, C), jnp.float32),
        in_specs=[pl.BlockSpec(memory_space=vmem)] * 5,
        out_specs=pl.BlockSpec(memory_space=vmem),
        scratch_shapes=[pltpu.VMEM((N, F_dim), jnp.float32)],
    )(x, w_stack, b_stack, fc_w, fc_b)


if __name__ == "__main__":
    # Small shapes consistent with the module: embed_num=S=8, embed_dim=D=32,
    # class_num=C=3, kernel_num=Co=5, kernel_sizes=[2..6].
    N, S, D = 2, 8, 32
    Co = KERNEL_NUM
    C = 3
    F_dim = len(KERNEL_SIZES) * Co

    key = jax.random.PRNGKey(0)
    keys = jax.random.split(key, 2 * len(KERNEL_SIZES) + 3)

    x = jax.random.normal(keys[0], (N, S, D), dtype=jnp.float32)

    conv_ws, conv_bs = [], []
    for i, K in enumerate(KERNEL_SIZES):
        conv_ws.append(0.1 * jax.random.normal(keys[1 + 2 * i], (K, D, Co),
                                               dtype=jnp.float32))
        conv_bs.append(0.1 * jax.random.normal(keys[2 + 2 * i], (1, Co),
                                               dtype=jnp.float32))
    fc_w = 0.1 * jax.random.normal(keys[-2], (F_dim, C), dtype=jnp.float32)
    fc_b = 0.1 * jax.random.normal(keys[-1], (1, C), dtype=jnp.float32)

    fwd = jax.jit(kimcnn_forward)
    out = fwd(x, conv_ws, conv_bs, fc_w, fc_b)
    jax.block_until_ready(out)

    assert out.shape == (N, C)
    assert bool(jnp.all(jnp.isfinite(out)))
    # Softmax rows should sum to ~1 (loose tolerance: approx reciprocal).
    assert bool(jnp.all(jnp.abs(jnp.sum(out, axis=-1) - 1.0) < 1e-2))
    print("KERNEL_OK")
</pallas_src>

<mosaic_0001>
module attributes {stable_mosaic.version = 11 : i64} {
  func.func @kimcnn_kernel(%arg0: memref<2x8x32xf32, #tpu.memory_space<vmem>>, %arg1: memref<32x100xf32, #tpu.memory_space<vmem>>, %arg2: memref<1x25xf32, #tpu.memory_space<vmem>>, %arg3: memref<25x3xf32, #tpu.memory_space<vmem>>, %arg4: memref<1x3xf32, #tpu.memory_space<vmem>>, %arg5: memref<2x3xf32, #tpu.memory_space<vmem>>, %arg6: memref<2x25xf32, #tpu.memory_space<vmem>>) attributes {dimension_semantics = [], scalar_prefetch = 0 : i64, scratch_operands = 1 : i64, tpu.core_type = #tpu.core_type<tc>} {
    %c0 = arith.constant 0 : index
    %c0_0 = arith.constant 0 : index
    %c0_1 = arith.constant 0 : index
    %0 = vector.load %arg0[%c0, %c0_0, %c0_1] : memref<2x8x32xf32, #tpu.memory_space<vmem>>, vector<2x8x32xf32>
    %1 = vector.shape_cast %0 : vector<2x8x32xf32> to vector<16x32xf32>
    %c0_2 = arith.constant 0 : index
    %c0_3 = arith.constant 0 : index
    %2 = vector.load %arg1[%c0_2, %c0_3] : memref<32x100xf32, #tpu.memory_space<vmem>>, vector<32x100xf32>
    %cst = arith.constant dense<0.000000e+00> : vector<16x100xf32>
    %3 = tpu.matmul %1, %2, %cst {dimension_numbers = #tpu.dot_dimension_numbers<[1], [0], [0], [1], [0, 0, 1, 1], [], []>} : vector<16x32xf32>, vector<32x100xf32>, vector<16x100xf32> -> vector<16x100xf32>
    %4 = vector.shape_cast %3 : vector<16x100xf32> to vector<2x8x100xf32>
    %5 = vector.extract_strided_slice %4 {offsets = [0, 0, 0], sizes = [2, 7, 5], strides = [1, 1, 1]} : vector<2x8x100xf32> to vector<2x7x5xf32>
    %6 = vector.extract_strided_slice %4 {offsets = [0, 1, 5], sizes = [2, 7, 5], strides = [1, 1, 1]} : vector<2x8x100xf32> to vector<2x7x5xf32>
    %7 = arith.addf %5, %6 : vector<2x7x5xf32>
    %cst_4 = arith.constant dense<0xFF800000> : vector<2x5xf32>
    %8 = vector.multi_reduction <maximumf>, %7, %cst_4 [1] : vector<2x7x5xf32> to vector<2x5xf32>
    %c0_5 = arith.constant 0 : index
    %c0_6 = arith.constant 0 : index
    %9 = vector.load %arg6[%c0_5, %c0_6] : memref<2x25xf32, #tpu.memory_space<vmem>>, vector<2x5xf32>
    tpu.vector_store %arg6[%c0_5, %c0_6], %8 {strides = array<i32>} : memref<2x25xf32, #tpu.memory_space<vmem>>, vector<2x5xf32>,
    %10 = vector.extract_strided_slice %4 {offsets = [0, 0, 10], sizes = [2, 6, 5], strides = [1, 1, 1]} : vector<2x8x100xf32> to vector<2x6x5xf32>
    %11 = vector.extract_strided_slice %4 {offsets = [0, 1, 15], sizes = [2, 6, 5], strides = [1, 1, 1]} : vector<2x8x100xf32> to vector<2x6x5xf32>
    %12 = arith.addf %10, %11 : vector<2x6x5xf32>
    %13 = vector.extract_strided_slice %4 {offsets = [0, 2, 20], sizes = [2, 6, 5], strides = [1, 1, 1]} : vector<2x8x100xf32> to vector<2x6x5xf32>
    %14 = arith.addf %12, %13 : vector<2x6x5xf32>
    %cst_7 = arith.constant dense<0xFF800000> : vector<2x5xf32>
    %15 = vector.multi_reduction <maximumf>, %14, %cst_7 [1] : vector<2x6x5xf32> to vector<2x5xf32>
    %c0_8 = arith.constant 0 : index
    %c5 = arith.constant 5 : index
    %16 = vector.load %arg6[%c0_8, %c5] : memref<2x25xf32, #tpu.memory_space<vmem>>, vector<2x5xf32>
    tpu.vector_store %arg6[%c0_8, %c5], %15 {strides = array<i32>} : memref<2x25xf32, #tpu.memory_space<vmem>>, vector<2x5xf32>,
    %17 = vector.extract_strided_slice %4 {offsets = [0, 0, 25], sizes = [2, 5, 5], strides = [1, 1, 1]} : vector<2x8x100xf32> to vector<2x5x5xf32>
    %18 = vector.extract_strided_slice %4 {offsets = [0, 1, 30], sizes = [2, 5, 5], strides = [1, 1, 1]} : vector<2x8x100xf32> to vector<2x5x5xf32>
    %19 = arith.addf %17, %18 : vector<2x5x5xf32>
    %20 = vector.extract_strided_slice %4 {offsets = [0, 2, 35], sizes = [2, 5, 5], strides = [1, 1, 1]} : vector<2x8x100xf32> to vector<2x5x5xf32>
    %21 = arith.addf %19, %20 : vector<2x5x5xf32>
    %22 = vector.extract_strided_slice %4 {offsets = [0, 3, 40], sizes = [2, 5, 5], strides = [1, 1, 1]} : vector<2x8x100xf32> to vector<2x5x5xf32>
    %23 = arith.addf %21, %22 : vector<2x5x5xf32>
    %cst_9 = arith.constant dense<0xFF800000> : vector<2x5xf32>
    %24 = vector.multi_reduction <maximumf>, %23, %cst_9 [1] : vector<2x5x5xf32> to vector<2x5xf32>
    %c0_10 = arith.constant 0 : index
    %c10 = arith.constant 10 : index
    %25 = vector.load %arg6[%c0_10, %c10] : memref<2x25xf32, #tpu.memory_space<vmem>>, vector<2x5xf32>
    tpu.vector_store %arg6[%c0_10, %c10], %24 {strides = array<i32>} : memref<2x25xf32, #tpu.memory_space<vmem>>, vector<2x5xf32>,
    %26 = vector.extract_strided_slice %4 {offsets = [0, 0, 45], sizes = [2, 4, 5], strides = [1, 1, 1]} : vector<2x8x100xf32> to vector<2x4x5xf32>
    %27 = vector.extract_strided_slice %4 {offsets = [0, 1, 50], sizes = [2, 4, 5], strides = [1, 1, 1]} : vector<2x8x100xf32> to vector<2x4x5xf32>
    %28 = arith.addf %26, %27 : vector<2x4x5xf32>
    %29 = vector.extract_strided_slice %4 {offsets = [0, 2, 55], sizes = [2, 4, 5], strides = [1, 1, 1]} : vector<2x8x100xf32> to vector<2x4x5xf32>
    %30 = arith.addf %28, %29 : vector<2x4x5xf32>
    %31 = vector.extract_strided_slice %4 {offsets = [0, 3, 60], sizes = [2, 4, 5], strides = [1, 1, 1]} : vector<2x8x100xf32> to vector<2x4x5xf32>
    %32 = arith.addf %30, %31 : vector<2x4x5xf32>
    %33 = vector.extract_strided_slice %4 {offsets = [0, 4, 65], sizes = [2, 4, 5], strides = [1, 1, 1]} : vector<2x8x100xf32> to vector<2x4x5xf32>
    %34 = arith.addf %32, %33 : vector<2x4x5xf32>
    %cst_11 = arith.constant dense<0xFF800000> : vector<2x5xf32>
    %35 = vector.multi_reduction <maximumf>, %34, %cst_11 [1] : vector<2x4x5xf32> to vector<2x5xf32>
    %c0_12 = arith.constant 0 : index
    %c15 = arith.constant 15 : index
    %36 = vector.load %arg6[%c0_12, %c15] : memref<2x25xf32, #tpu.memory_space<vmem>>, vector<2x5xf32>
    tpu.vector_store %arg6[%c0_12, %c15], %35 {strides = array<i32>} : memref<2x25xf32, #tpu.memory_space<vmem>>, vector<2x5xf32>,
    %37 = vector.extract_strided_slice %4 {offsets = [0, 0, 70], sizes = [2, 3, 5], strides = [1, 1, 1]} : vector<2x8x100xf32> to vector<2x3x5xf32>
    %38 = vector.extract_strided_slice %4 {offsets = [0, 1, 75], sizes = [2, 3, 5], strides = [1, 1, 1]} : vector<2x8x100xf32> to vector<2x3x5xf32>
    %39 = arith.addf %37, %38 : vector<2x3x5xf32>
    %40 = vector.extract_strided_slice %4 {offsets = [0, 2, 80], sizes = [2, 3, 5], strides = [1, 1, 1]} : vector<2x8x100xf32> to vector<2x3x5xf32>
    %41 = arith.addf %39, %40 : vector<2x3x5xf32>
    %42 = vector.extract_strided_slice %4 {offsets = [0, 3, 85], sizes = [2, 3, 5], strides = [1, 1, 1]} : vector<2x8x100xf32> to vector<2x3x5xf32>
    %43 = arith.addf %41, %42 : vector<2x3x5xf32>
    %44 = vector.extract_strided_slice %4 {offsets = [0, 4, 90], sizes = [2, 3, 5], strides = [1, 1, 1]} : vector<2x8x100xf32> to vector<2x3x5xf32>
    %45 = arith.addf %43, %44 : vector<2x3x5xf32>
    %46 = vector.extract_strided_slice %4 {offsets = [0, 5, 95], sizes = [2, 3, 5], strides = [1, 1, 1]} : vector<2x8x100xf32> to vector<2x3x5xf32>
    %47 = arith.addf %45, %46 : vector<2x3x5xf32>
    %cst_13 = arith.constant dense<0xFF800000> : vector<2x5xf32>
    %48 = vector.multi_reduction <maximumf>, %47, %cst_13 [1] : vector<2x3x5xf32> to vector<2x5xf32>
    %c0_14 = arith.constant 0 : index
    %c20 = arith.constant 20 : index
    %49 = vector.load %arg6[%c0_14, %c20] : memref<2x25xf32, #tpu.memory_space<vmem>>, vector<2x5xf32>
    tpu.vector_store %arg6[%c0_14, %c20], %48 {strides = array<i32>} : memref<2x25xf32, #tpu.memory_space<vmem>>, vector<2x5xf32>,
    %c0_15 = arith.constant 0 : index
    %c0_16 = arith.constant 0 : index
    %50 = vector.load %arg6[%c0_15, %c0_16] : memref<2x25xf32, #tpu.memory_space<vmem>>, vector<2x25xf32>
    %c0_17 = arith.constant 0 : index
    %c0_18 = arith.constant 0 : index
    %51 = vector.load %arg2[%c0_17, %c0_18] : memref<1x25xf32, #tpu.memory_space<vmem>>, vector<1x25xf32>
    %52 = vector.broadcast %51 : vector<1x25xf32> to vector<2x25xf32>
    %53 = arith.addf %50, %52 : vector<2x25xf32>
    %cst_19 = arith.constant 0.000000e+00 : f32
    %54 = vector.broadcast %cst_19 : f32 to vector<2x25xf32>
    %55 = arith.maximumf %53, %54 : vector<2x25xf32>
    %c0_20 = arith.constant 0 : index
    %c0_21 = arith.constant 0 : index
    %56 = vector.load %arg3[%c0_20, %c0_21] : memref<25x3xf32, #tpu.memory_space<vmem>>, vector<25x3xf32>
    %cst_22 = arith.constant dense<0.000000e+00> : vector<2x3xf32>
    %57 = tpu.matmul %55, %56, %cst_22 {dimension_numbers = #tpu.dot_dimension_numbers<[1], [0], [0], [1], [0, 0, 1, 1], [], []>} : vector<2x25xf32>, vector<25x3xf32>, vector<2x3xf32> -> vector<2x3xf32>
    %c0_23 = arith.constant 0 : index
    %c0_24 = arith.constant 0 : index
    %58 = vector.load %arg4[%c0_23, %c0_24] : memref<1x3xf32, #tpu.memory_space<vmem>>, vector<1x3xf32>
    %59 = vector.broadcast %58 : vector<1x3xf32> to vector<2x3xf32>
    %60 = arith.addf %57, %59 : vector<2x3xf32>
    %cst_25 = arith.constant dense<0xFF800000> : vector<2xf32>
    %61 = vector.multi_reduction <maximumf>, %60, %cst_25 [1] : vector<2x3xf32> to vector<2xf32>
    %62 = vector.shape_cast %61 : vector<2xf32> to vector<2x1xf32>
    %63 = vector.broadcast %62 : vector<2x1xf32> to vector<2x3xf32>
    %64 = arith.subf %60, %63 : vector<2x3xf32>
    %65 = math.exp %64 : vector<2x3xf32>
    %cst_26 = arith.constant dense<0.000000e+00> : vector<2xf32>
    %66 = vector.multi_reduction <add>, %65, %cst_26 [1] : vector<2x3xf32> to vector<2xf32>
    %67 = vector.shape_cast %66 : vector<2xf32> to vector<2x1xf32>
    %68 = tpu.reciprocal %67 {approx = true} : vector<2x1xf32> -> vector<2x1xf32>
    %69 = vector.broadcast %68 : vector<2x1xf32> to vector<2x3xf32>
    %70 = arith.mulf %65, %69 : vector<2x3xf32>
    %c0_27 = arith.constant 0 : index
    %c0_28 = arith.constant 0 : index
    %71 = vector.load %arg5[%c0_27, %c0_28] : memref<2x3xf32, #tpu.memory_space<vmem>>, vector<2x3xf32>
    tpu.vector_store %arg5[%c0_27, %c0_28], %70 {strides = array<i32>} : memref<2x3xf32, #tpu.memory_space<vmem>>, vector<2x3xf32>,
    return
  }
}

</mosaic_0001>

<llo_original>
// kernel: kimcnn_forward.1
$region0: #{kimcnn_forward.1}
  #allocation0 [shape = 'u32[]', space=smem, size = 0x4, offset = 0x4, fixed_abs, tag = 'smem constant byte address 0x4 - core index']
  #allocation1 [shape = 'u32[72,128]{1,0:T(1,128)}', space=vmem, size = 0x9000, scoped, tag = 'internal scratch']
  #allocation2 [shape = 'f32[2,25]{1,0:T(2,128)}', space=vmem, size = 0x400, scoped, tag = 'scratch operand']
  %s0 = inlined_call_operand.vmem [shape: f32[2,8,32], index: 0, kind: input, shape index: {}]
  %s1 = inlined_call_operand.vmem [shape: f32[32,100], index: 1, kind: input, shape index: {}]
  %s2 = inlined_call_operand.vmem [shape: f32[1,25], index: 2, kind: input, shape index: {}]
  %s3 = inlined_call_operand.vmem [shape: f32[25,3], index: 3, kind: input, shape index: {}]
  %s4 = inlined_call_operand.vmem [shape: f32[1,3], index: 4, kind: input, shape index: {}]
  %s5 = inlined_call_operand.hbm [shape: f32[2,3], index: 5, kind: output, shape index: {}]
  %s6 = sld [smem:[#allocation0]]
  $region30: #{kimcnn_forward.1} parent=0
    _
  %s8 = ssub.s32 1, %s6
  %s9 = scalar_select 0, %s8, %s6
  $region1: #{kimcnn_forward.1} parent=0
    #allocation3 [shape = 'u8[1024]{0}', space=vmem, size = 0x400, scoped, tag = 'output window, operand 0, single buffered']
    #allocation4 [shape = 's32[1]{0}', space=sflag, size = 0x4, scoped, tag = 'scoped memory for kimcnn_forward.1']
    %10 = vsyncpa [#allocation4], 0
    // Predicated region
    $region2: #{kimcnn_forward.1} parent=1 // pred_check
      _
    $region3: #{kimcnn_forward.1} parent=1 // pred_check_branch
      %12 = sbr.rel (0) target = $region5
    $region4: #{kimcnn_forward.1} parent=1 // pred_region
      _
    $region5: #{kimcnn_forward.1} parent=1 // pred_fallthru
      _
    // Predicated region
    $region6: #{kimcnn_forward.1} parent=1 // pred_check
      _
    $region7: #{kimcnn_forward.1} parent=1 // pred_check_branch
      %14 = sbr.rel (0) target = $region9
    $region8: #{kimcnn_forward.1} parent=1 // pred_region
      _
    $region9: #{kimcnn_forward.1} parent=1 // pred_fallthru
      _
    // Predicated region
    $region10: #{kimcnn_forward.1} parent=1 // pred_check
      _
    $region11: #{kimcnn_forward.1} parent=1 // pred_check_branch
      %16 = sbr.rel (0) target = $region13
    $region12: #{kimcnn_forward.1} parent=1 // pred_region
      _
    $region13: #{kimcnn_forward.1} parent=1 // pred_fallthru
      _
    // Predicated region
    $region14: #{kimcnn_forward.1} parent=1 // pred_check
      _
    $region15: #{kimcnn_forward.1} parent=1 // pred_check_branch
      %18 = sbr.rel (0) target = $region17
    $region16: #{kimcnn_forward.1} parent=1 // pred_region
      _
    $region17: #{kimcnn_forward.1} parent=1 // pred_fallthru
      _
    // Predicated region
    $region18: #{kimcnn_forward.1} parent=1 // pred_check
      _
    $region19: #{kimcnn_forward.1} parent=1 // pred_check_branch
      %20 = sbr.rel (0) target = $region21
    $region20: #{kimcnn_forward.1} parent=1 // pred_region
      _
    $region21: #{kimcnn_forward.1} parent=1 // pred_fallthru
      _
    %v21 = vld [vmem:[%s0] sm:$0xff]
    %v22 = vld [vmem:[%s0 + $0x8] sm:$0xff]
    %v23 = vld [vmem:[%s1] sm:$0xff]
    %v24 = vld [vmem:[%s1 + $0x8] sm:$0xff]
    %v25 = vld [vmem:[%s1 + $0x10] sm:$0xff]
    %v26 = vld [vmem:[%s1 + $0x18] sm:$0xff]
    %vm27 = vcmask 261120
    %v29 = vsel %vm27, %v21, 0
    %v32 = vsel %vm27, %v22, 0
    %34 = vmatpush.msra.mxu0 0.0
    %35 = vmatpush.msra.mxu0 0.0
    %36 = vmatpush.msra.mxu0 0.0
    %37 = vmatpush.msra.mxu0 0.0
    %38 = vmatpush.msra.mxu0 0.0
    %39 = vmatpush.msra.mxu0 0.0
    %40 = vmatpush.msra.mxu0 0.0
    %41 = vmatpush.msra.mxu0 0.0
    %42 = vmatpush.msra.mxu0 0.0
    %43 = vmatpush.msra.mxu0 0.0
    %44 = vmatpush.msra.mxu0 0.0
    %45 = vmatpush.msra.mxu0 0.0
    %46 = vmatpush.msra.mxu0 %v26
    %47 = vmatpush.msra.mxu0 %v25
    %48 = vmatpush.msra.mxu0 %v24
    %49 = vmatpush.msra.mxu0 %v23
    %50 = vmatmul.f32.gmra.mxu0 %v29
    %v51 = vpop.f32.mrf.mxu0
    %v52 = vadd.f32 0.0, %v51
    %53 = vmatmul.f32.gmra.mxu0 %v32
    %v54 = vpop.f32.mrf.mxu0
    %v55 = vadd.f32 0.0, %v54
    %56 = vdwg.mxu0
    %v59 = vrot.slane %v52, 1
    %v60 = vrot.slane %v55, 1
    %61 = vrot.lane.b32.xlu0 %v59, 123
    %v62 = vpop.permute.xlu0 %61
    %63 = vrot.lane.b32.xlu0 %v60, 123
    %v64 = vpop.permute.xlu0 %63
    %v67 = vadd.f32 %v52, %v62
    %v68 = vadd.f32 %v55, %v64
    %vm69 = vcmask 38912
    %v70 = vsel %vm69, %v67, -inf
    %v71 = vrot.slane %v70, 4
    %v72 = vmax.f32 %v70, %v71
    %v73 = vrot.slane %v72, 2
    %v74 = vmax.f32 %v72, %v73
    %v75 = vrot.slane %v74, 1
    %v76 = vmax.f32 %v74, %v75
    %v77 = vsel %vm69, %v68, -inf
    %v78 = vrot.slane %v77, 4
    %v79 = vmax.f32 %v77, %v78
    %v80 = vrot.slane %v79, 2
    %v81 = vmax.f32 %v79, %v80
    %v82 = vrot.slane %v81, 1
    %v83 = vmax.f32 %v81, %v82
    %vm86 = vcmask 1041409
    %v87 = vsel %vm86, %v83, %v76
    %vm89 = vcmask 33792
    %90 = vst.msk [vmem:[#allocation2] sm:$0x3] %vm89, %v87
    %v91 = vrot.slane %v52, 2
    %v92 = vrot.slane %v55, 2
    %93 = vrot.lane.b32.xlu0 %v91, 118
    %v94 = vpop.permute.xlu0 %93
    %95 = vrot.lane.b32.xlu0 %v92, 118
    %v96 = vpop.permute.xlu0 %95
    %v99 = vadd.f32 %v67, %v94
    %v100 = vadd.f32 %v68, %v96
    %vm101 = vcmask 119888
    %v102 = vsel %vm101, %v99, -inf
    %v103 = vrot.slane %v102, 4
    %v104 = vmax.f32 %v102, %v103
    %v105 = vrot.slane %v104, 2
    %v106 = vmax.f32 %v104, %v105
    %v107 = vrot.slane %v106, 1
    %v108 = vmax.f32 %v106, %v107
    %v109 = vsel %vm101, %v100, -inf
    %v110 = vrot.slane %v109, 4
    %v111 = vmax.f32 %v109, %v110
    %v112 = vrot.slane %v111, 2
    %v113 = vmax.f32 %v111, %v112
    %v114 = vrot.slane %v113, 1
    %v115 = vmax.f32 %v113, %v114
    %v118 = vsel %vm86, %v115, %v108
    %119 = vrot.lane.b32.xlu0 %v118, 123
    %v120 = vpop.permute.xlu0 %119
    %vm122 = vcmask 74792
    %123 = vst.msk [vmem:[#allocation2] sm:$0x3] %vm122, %v120
    %v124 = vrot.slane %v52, 3
    %v125 = vrot.slane %v55, 3
    %126 = vrot.lane.b32.xlu0 %v124, 113
    %v127 = vpop.permute.xlu0 %126
    %128 = vrot.lane.b32.xlu0 %v125, 113
    %v129 = vpop.permute.xlu0 %128
    %v132 = vadd.f32 %v99, %v127
    %v133 = vadd.f32 %v100, %v129
    %vm134 = vcmask 241864
    %v135 = vsel %vm134, %v132, -inf
    %v136 = vrot.slane %v135, 4
    %v137 = vmax.f32 %v135, %v136
    %v138 = vrot.slane %v137, 2
    %v139 = vmax.f32 %v137, %v138
    %v140 = vrot.slane %v139, 1
    %v141 = vmax.f32 %v139, %v140
    %v142 = vsel %vm134, %v133, -inf
    %v143 = vrot.slane %v142, 4
    %v144 = vmax.f32 %v142, %v143
    %v145 = vrot.slane %v144, 2
    %v146 = vmax.f32 %v144, %v145
    %v147 = vrot.slane %v146, 1
    %v148 = vmax.f32 %v146, %v147
    %v151 = vsel %vm86, %v148, %v141
    %152 = vrot.lane.b32.xlu0 %v151, 113
    %v153 = vpop.permute.xlu0 %152
    %vm155 = vcmask 115792
    %156 = vst.msk [vmem:[#allocation2] sm:$0x3] %vm155, %v153
    %v157 = vrot.slane %v52, 4
    %v158 = vrot.slane %v55, 4
    %159 = vrot.lane.b32.xlu0 %v157, 108
    %v160 = vpop.permute.xlu0 %159
    %161 = vrot.lane.b32.xlu0 %v158, 108
    %v162 = vpop.permute.xlu0 %161
    %v165 = vadd.f32 %v132, %v160
    %v166 = vadd.f32 %v133, %v162
    %vm167 = vcmask 404840
    %v168 = vsel %vm167, %v165, -inf
    %v169 = vrot.slane %v168, 4
    %v170 = vmax.f32 %v168, %v169
    %v171 = vrot.slane %v170, 2
    %v172 = vmax.f32 %v170, %v171
    %v173 = vrot.slane %v172, 1
    %v174 = vmax.f32 %v172, %v173
    %v175 = vsel %vm167, %v166, -inf
    %v176 = vrot.slane %v175, 4
    %v177 = vmax.f32 %v175, %v176
    %v178 = vrot.slane %v177, 2
    %v179 = vmax.f32 %v177, %v178
    %v180 = vrot.slane %v179, 1
    %v181 = vmax.f32 %v179, %v180
    %v184 = vsel %vm86, %v181, %v174
    %185 = vrot.lane.b32.xlu0 %v184, 98
    %v186 = vpop.permute.xlu0 %185
    %vm188 = vcmask 156792
    %189 = vst.msk [vmem:[#allocation2] sm:$0x3] %vm188, %v186
    %v190 = vrot.slane %v52, 5
    %v191 = vrot.slane %v55, 5
    %192 = vrot.lane.b32.xlu0 %v190, 103
    %v193 = vpop.permute.xlu0 %192
    %194 = vrot.lane.b32.xlu0 %v191, 103
    %v195 = vpop.permute.xlu0 %194
    %v198 = vadd.f32 %v165, %v193
    %v199 = vadd.f32 %v166, %v195
    %vm200 = vcmask 608816
    %v201 = vsel %vm200, %v198, -inf
    %v202 = vrot.slane %v201, 4
    %v203 = vmax.f32 %v201, %v202
    %v204 = vrot.slane %v203, 2
    %v205 = vmax.f32 %v203, %v204
    %v206 = vrot.slane %v205, 1
    %v207 = vmax.f32 %v205, %v206
    %v208 = vsel %vm200, %v199, -inf
    %v209 = vrot.slane %v208, 4
    %v210 = vmax.f32 %v208, %v209
    %v211 = vrot.slane %v210, 2
    %v212 = vmax.f32 %v210, %v211
    %v213 = vrot.slane %v212, 1
    %v214 = vmax.f32 %v212, %v213
    %v217 = vsel %vm86, %v214, %v207
    %218 = vrot.lane.b32.xlu0 %v217, 78
    %v219 = vpop.permute.xlu0 %218
    %vm221 = vcmask 197792
    %222 = vst.msk [vmem:[#allocation2] sm:$0x3] %vm221, %v219
    %v223 = vld [vmem:[#allocation2] sm:$0x3]
    %v224 = vld [vmem:[%s2] sm:$0x1]
    %v226 = vperm.slane %v224, 0
    %v228 = vadd.f32 %v223, %v226
    %v229 = vmax.f32 %v228, 0.0
    %v230 = vld [vmem:[%s3] sm:$0xff]
    %v231 = vld [vmem:[%s3 + $0x8] sm:$0xff]
    %v232 = vld [vmem:[%s3 + $0x10] sm:$0xff]
    %v233 = vld [vmem:[%s3 + $0x18] sm:$0x1]
    %v234 = vld [vmem:[%s4] sm:$0x1]
    %v236 = vperm.slane %v234, 0
    %vm238 = vcmask 203776
    %v240 = vsel %vm238, %v229, 0
    %vm242 = vcmask 1040384
    %v244 = vsel %vm242, %v233, 0
    %246 = vmatpush.msra.mxu0 0.0
    %247 = vmatpush.msra.mxu0 0.0
    %248 = vmatpush.msra.mxu0 0.0
    %249 = vmatpush.msra.mxu0 0.0
    %250 = vmatpush.msra.mxu0 0.0
    %251 = vmatpush.msra.mxu0 0.0
    %252 = vmatpush.msra.mxu0 0.0
    %253 = vmatpush.msra.mxu0 0.0
    %254 = vmatpush.msra.mxu0 0.0
    %255 = vmatpush.msra.mxu0 0.0
    %256 = vmatpush.msra.mxu0 0.0
    %257 = vmatpush.msra.mxu0 0.0
    %258 = vmatpush.msra.mxu0 %v244
    %259 = vmatpush.msra.mxu0 %v232
    %260 = vmatpush.msra.mxu0 %v231
    %261 = vmatpush.msra.mxu0 %v230
    %262 = vmatmul.f32.gmra.mxu0 %v240
    %v263 = vpop.f32.mrf.mxu0
    %v264 = vadd.f32 %v236, %v263
    %265 = vdwg.mxu0
    %vm266 = vcmask 17408
    %v267 = vsel %vm266, %v264, -inf
    %268 = vmax.xlane.f32.xlu0 %v267
    %v269 = vpop.xlane.xlu0 %268
    %v270 = vsub.f32 %v264, %v269
    %v271 = vmul.f32 %v270, 1.442695
    %v272 = vpow.pop %v271
    %v273 = vsel %vm266, %v272, 0.0
    %274 = vadd.xlane.f32.xlu0 %v273
    %v275 = vpop.xlane.xlu0 %274
    %v276 = vrcp.pop %v275
    %v277 = vmul.f32 %v272, %v276
    %278 = vst.msk [vmem:[#allocation3] sm:$0x3] %vm266, %v277
    // Predicated region
    $region22: #{kimcnn_forward.1} parent=1 // pred_check
      _
    $region23: #{kimcnn_forward.1} parent=1 // pred_check_branch
      %280 = sbr.rel (0) target = $region25
    $region24: #{kimcnn_forward.1} parent=1 // pred_region
      %282 = vsyncadd [#allocation4], 0
      %s284 = sshll.u32 [#allocation3], 4
      %s285 = int_to_ptr.vmem [resolvable:$true] %s284
      %s286 = sshll.u32 %s5, 4
      %s287 = int_to_ptr.hbm [resolvable:$true] %s286
      %289 = dma.vmem_to_hbm [thread:$0]  %s285, 32, %s287, [#allocation4]
    $region25: #{kimcnn_forward.1} parent=1 // pred_fallthru
      _
    // Predicated region
    $region26: #{kimcnn_forward.1} parent=1 // pred_check
      _
    $region27: #{kimcnn_forward.1} parent=1 // pred_check_branch
      %291 = sbr.rel (0) target = $region29
    $region28: #{kimcnn_forward.1} parent=1 // pred_region
      %293 = dma.done [#allocation4], 32
    $region29: #{kimcnn_forward.1} parent=1 // pred_fallthru
      _
    %294 = vsyncpa [#allocation4], 1

</llo_original>
